<compile_context>
chip_gen: v5e
topology: v5e:2x2
jax: 0.10.0
libtpu: 0.0.40
codegen_flags: <defaults>
</compile_context>

<pallas_src>
import jax
import jax.numpy as jnp
from jax.experimental import pallas as pl
from jax.experimental.pallas import tpu as pltpu


def mlp_kernel(x_ref, w1_ref, b1_ref, w2_ref, b2_ref,
               w3_ref, b3_ref, w4_ref, b4_ref, o_ref):
    # fc1 -> relu. Operands are consumed at their storage dtype (f32, or bf16
    # when matmul_dtype=bf16); accumulation is always f32.
    h = jnp.dot(x_ref[...], w1_ref[...],
                preferred_element_type=jnp.float32) + b1_ref[...]
    h = jnp.maximum(h, 0.0)

    # dropout(p=0.2)
    # TODO(synk): dropout is identity here (inference/eval semantics); a
    # training-mode mask would use pltpu.prng_seed + pltpu.prng_random_bits
    # with 1/(1-p) scaling.

    # fc2 -> relu (cast only the matmul LHS to the weight dtype; no-op in f32)
    h = jnp.dot(h.astype(w2_ref.dtype), w2_ref[...],
                preferred_element_type=jnp.float32) + b2_ref[...]
    h = jnp.maximum(h, 0.0)

    # fc3 -> relu
    h = jnp.dot(h.astype(w3_ref.dtype), w3_ref[...],
                preferred_element_type=jnp.float32) + b3_ref[...]
    h = jnp.maximum(h, 0.0)

    # fc4 -> sigmoid (stable form: exp argument is always <= 0, no inf)
    logits = jnp.dot(h.astype(w4_ref.dtype), w4_ref[...],
                     preferred_element_type=jnp.float32) + b4_ref[...]
    pos = 1.0 / (1.0 + jnp.exp(-jnp.abs(logits)))
    o_ref[...] = jnp.where(logits >= 0.0, pos, 1.0 - pos).astype(o_ref.dtype)


def mlp_forward(x, params, *, tile_b=512, matmul_dtype=None):
    """x: (B, D) float32. params: dict of f32 weights/biases. Returns (B, 2).

    matmul_dtype: optional (e.g. jnp.bfloat16 on v6e/v7x) — casts x and the
    weight matrices for the MXU; biases, activations and accumulation stay f32.
    """
    B, D = x.shape
    w1, b1 = params["w1"], params["b1"]   # (D,100), (1,100)
    w2, b2 = params["w2"], params["b2"]   # (100,50), (1,50)
    w3, b3 = params["w3"], params["b3"]   # (50,10), (1,10)
    w4, b4 = params["w4"], params["b4"]   # (10,2),  (1,2)

    if matmul_dtype is not None:
        x = x.astype(matmul_dtype)
        w1, w2, w3, w4 = (w.astype(matmul_dtype) for w in (w1, w2, w3, w4))

    # Large batch tile: whole batch if it's small, else a multiple of 8 so the
    # block stays (8,128)-legal. Keeps per-step pipeline overhead negligible;
    # for large B on v7x the >=2 "parallel" grid steps shard across both TCs.
    if B <= tile_b:
        tile_b = B                      # grid collapses to a single step
    else:
        tile_b = max(8, (tile_b // 8) * 8)
    grid = (pl.cdiv(B, tile_b),)

    def invariant(arr):
        # Whole-array block with a constant block index: fetched once, kept
        # resident across all grid steps (no per-step weight re-DMA).
        return pl.BlockSpec(arr.shape, lambda i: (0, 0))

    n_out = w4.shape[1]
    return pl.pallas_call(
        mlp_kernel,
        out_shape=jax.ShapeDtypeStruct((B, n_out), jnp.float32),
        grid_spec=pltpu.PrefetchScalarGridSpec(
            num_scalar_prefetch=0,
            grid=grid,
            in_specs=[
                pl.BlockSpec((tile_b, D), lambda i: (i, 0)),  # x: tiled batch
                invariant(w1), invariant(b1),
                invariant(w2), invariant(b2),
                invariant(w3), invariant(b3),
                invariant(w4), invariant(b4),
            ],
            # NOTE: out last dim = 2 -> masked stores; negligible at this size.
            # If profiling ever shows the epilogue write-bound, pad to a
            # lane-dense (tile_b, 128) block and slice in the wrapper.
            out_specs=pl.BlockSpec((tile_b, n_out), lambda i: (i, 0)),
        ),
        compiler_params=pltpu.CompilerParams(
            dimension_semantics=("parallel",)),
    )(x, w1, b1, w2, b2, w3, b3, w4, b4)


def init_params(key, x_shape):
    """Deterministic init matching nn.Linear default (uniform +/- 1/sqrt(fan_in))."""
    dims = [(x_shape, 100), (100, 50), (50, 10), (10, 2)]
    params = {}
    for idx, (fan_in, fan_out) in enumerate(dims, start=1):
        key, kw, kb = jax.random.split(key, 3)
        bound = 1.0 / jnp.sqrt(jnp.float32(fan_in))
        params[f"w{idx}"] = jax.random.uniform(
            kw, (fan_in, fan_out), jnp.float32, -bound, bound)
        params[f"b{idx}"] = jax.random.uniform(
            kb, (1, fan_out), jnp.float32, -bound, bound)
    return params


def reference_forward(x, params):
    h = jnp.maximum(x @ params["w1"] + params["b1"], 0.0)
    h = jnp.maximum(h @ params["w2"] + params["b2"], 0.0)
    h = jnp.maximum(h @ params["w3"] + params["b3"], 0.0)
    return jax.nn.sigmoid(h @ params["w4"] + params["b4"])


if __name__ == "__main__":
    key = jax.random.PRNGKey(0)
    key, kx, kp = jax.random.split(key, 3)

    B, D = 16, 32            # batch=16, input feature size x_shape=32
    x = jax.random.normal(kx, (B, D), jnp.float32)
    params = init_params(kp, D)

    # f32 path: exact eval-mode semantics of the PyTorch module.
    out = jax.block_until_ready(mlp_forward(x, params))
    ref = reference_forward(x, params)
    assert out.shape == (B, 2)
    assert jnp.allclose(out, ref, atol=1e-5, rtol=1e-5), "mismatch vs reference"

    # bf16 matmul-operand path (v6e/v7x option); f32 accumulation/activations.
    out_bf16 = jax.block_until_ready(
        mlp_forward(x, params, matmul_dtype=jnp.bfloat16))
    assert out_bf16.shape == (B, 2)
    assert jnp.allclose(out_bf16, ref, atol=5e-2, rtol=0), "bf16 path drifted"

    print("KERNEL_OK")
</pallas_src>

<mosaic_0001>
module attributes {stable_mosaic.version = 11 : i64} {
  func.func @mlp_kernel(%arg0: i32, %arg1: memref<16x32xf32, #tpu.memory_space<vmem>>, %arg2: memref<32x100xf32, #tpu.memory_space<vmem>>, %arg3: memref<1x100xf32, #tpu.memory_space<vmem>>, %arg4: memref<100x50xf32, #tpu.memory_space<vmem>>, %arg5: memref<1x50xf32, #tpu.memory_space<vmem>>, %arg6: memref<50x10xf32, #tpu.memory_space<vmem>>, %arg7: memref<1x10xf32, #tpu.memory_space<vmem>>, %arg8: memref<10x2xf32, #tpu.memory_space<vmem>>, %arg9: memref<1x2xf32, #tpu.memory_space<vmem>>, %arg10: memref<16x2xf32, #tpu.memory_space<vmem>>) attributes {dimension_semantics = [#tpu.dimension_semantics<parallel>], iteration_bounds = array<i64: 1>, scalar_prefetch = 0 : i64, scratch_operands = 0 : i64, tpu.core_type = #tpu.core_type<tc>, window_params = [{transform_indices = @transform_0, window_bounds = array<i64: 16, 32>}, {pipeline_mode = #tpu.pipeline_mode<synchronous>, transform_indices = @transform_1, window_bounds = array<i64: 32, 100>}, {pipeline_mode = #tpu.pipeline_mode<synchronous>, transform_indices = @transform_2, window_bounds = array<i64: 1, 100>}, {pipeline_mode = #tpu.pipeline_mode<synchronous>, transform_indices = @transform_3, window_bounds = array<i64: 100, 50>}, {pipeline_mode = #tpu.pipeline_mode<synchronous>, transform_indices = @transform_4, window_bounds = array<i64: 1, 50>}, {pipeline_mode = #tpu.pipeline_mode<synchronous>, transform_indices = @transform_5, window_bounds = array<i64: 50, 10>}, {pipeline_mode = #tpu.pipeline_mode<synchronous>, transform_indices = @transform_6, window_bounds = array<i64: 1, 10>}, {pipeline_mode = #tpu.pipeline_mode<synchronous>, transform_indices = @transform_7, window_bounds = array<i64: 10, 2>}, {pipeline_mode = #tpu.pipeline_mode<synchronous>, transform_indices = @transform_8, window_bounds = array<i64: 1, 2>}, {transform_indices = @transform_9, window_bounds = array<i64: 16, 2>}]} {
    %c0 = arith.constant 0 : index
    %c0_0 = arith.constant 0 : index
    %0 = vector.load %arg1[%c0, %c0_0] : memref<16x32xf32, #tpu.memory_space<vmem>>, vector<16x32xf32>
    %c0_1 = arith.constant 0 : index
    %c0_2 = arith.constant 0 : index
    %1 = vector.load %arg2[%c0_1, %c0_2] : memref<32x100xf32, #tpu.memory_space<vmem>>, vector<32x100xf32>
    %cst = arith.constant dense<0.000000e+00> : vector<16x100xf32>
    %2 = tpu.matmul %0, %1, %cst {dimension_numbers = #tpu.dot_dimension_numbers<[1], [0], [0], [1], [0, 0, 1, 1], [], []>} : vector<16x32xf32>, vector<32x100xf32>, vector<16x100xf32> -> vector<16x100xf32>
    %c0_3 = arith.constant 0 : index
    %c0_4 = arith.constant 0 : index
    %3 = vector.load %arg3[%c0_3, %c0_4] : memref<1x100xf32, #tpu.memory_space<vmem>>, vector<1x100xf32>
    %4 = vector.broadcast %3 : vector<1x100xf32> to vector<16x100xf32>
    %5 = arith.addf %2, %4 : vector<16x100xf32>
    %cst_5 = arith.constant 0.000000e+00 : f32
    %6 = vector.broadcast %cst_5 : f32 to vector<16x100xf32>
    %7 = arith.maximumf %5, %6 : vector<16x100xf32>
    %c0_6 = arith.constant 0 : index
    %c0_7 = arith.constant 0 : index
    %8 = vector.load %arg4[%c0_6, %c0_7] : memref<100x50xf32, #tpu.memory_space<vmem>>, vector<100x50xf32>
    %cst_8 = arith.constant dense<0.000000e+00> : vector<16x50xf32>
    %9 = tpu.matmul %7, %8, %cst_8 {dimension_numbers = #tpu.dot_dimension_numbers<[1], [0], [0], [1], [0, 0, 1, 1], [], []>} : vector<16x100xf32>, vector<100x50xf32>, vector<16x50xf32> -> vector<16x50xf32>
    %c0_9 = arith.constant 0 : index
    %c0_10 = arith.constant 0 : index
    %10 = vector.load %arg5[%c0_9, %c0_10] : memref<1x50xf32, #tpu.memory_space<vmem>>, vector<1x50xf32>
    %11 = vector.broadcast %10 : vector<1x50xf32> to vector<16x50xf32>
    %12 = arith.addf %9, %11 : vector<16x50xf32>
    %cst_11 = arith.constant 0.000000e+00 : f32
    %13 = vector.broadcast %cst_11 : f32 to vector<16x50xf32>
    %14 = arith.maximumf %12, %13 : vector<16x50xf32>
    %c0_12 = arith.constant 0 : index
    %c0_13 = arith.constant 0 : index
    %15 = vector.load %arg6[%c0_12, %c0_13] : memref<50x10xf32, #tpu.memory_space<vmem>>, vector<50x10xf32>
    %cst_14 = arith.constant dense<0.000000e+00> : vector<16x10xf32>
    %16 = tpu.matmul %14, %15, %cst_14 {dimension_numbers = #tpu.dot_dimension_numbers<[1], [0], [0], [1], [0, 0, 1, 1], [], []>} : vector<16x50xf32>, vector<50x10xf32>, vector<16x10xf32> -> vector<16x10xf32>
    %c0_15 = arith.constant 0 : index
    %c0_16 = arith.constant 0 : index
    %17 = vector.load %arg7[%c0_15, %c0_16] : memref<1x10xf32, #tpu.memory_space<vmem>>, vector<1x10xf32>
    %18 = vector.broadcast %17 : vector<1x10xf32> to vector<16x10xf32>
    %19 = arith.addf %16, %18 : vector<16x10xf32>
    %cst_17 = arith.constant 0.000000e+00 : f32
    %20 = vector.broadcast %cst_17 : f32 to vector<16x10xf32>
    %21 = arith.maximumf %19, %20 : vector<16x10xf32>
    %c0_18 = arith.constant 0 : index
    %c0_19 = arith.constant 0 : index
    %22 = vector.load %arg8[%c0_18, %c0_19] : memref<10x2xf32, #tpu.memory_space<vmem>>, vector<10x2xf32>
    %cst_20 = arith.constant dense<0.000000e+00> : vector<16x2xf32>
    %23 = tpu.matmul %21, %22, %cst_20 {dimension_numbers = #tpu.dot_dimension_numbers<[1], [0], [0], [1], [0, 0, 1, 1], [], []>} : vector<16x10xf32>, vector<10x2xf32>, vector<16x2xf32> -> vector<16x2xf32>
    %c0_21 = arith.constant 0 : index
    %c0_22 = arith.constant 0 : index
    %24 = vector.load %arg9[%c0_21, %c0_22] : memref<1x2xf32, #tpu.memory_space<vmem>>, vector<1x2xf32>
    %25 = vector.broadcast %24 : vector<1x2xf32> to vector<16x2xf32>
    %26 = arith.addf %23, %25 : vector<16x2xf32>
    %27 = math.absf %26 : vector<16x2xf32>
    %cst_23 = arith.constant 0.000000e+00 : f32
    %28 = vector.broadcast %cst_23 : f32 to vector<16x2xf32>
    %29 = arith.subf %28, %27 : vector<16x2xf32>
    %30 = math.exp %29 : vector<16x2xf32>
    %cst_24 = arith.constant 1.000000e+00 : f32
    %31 = vector.broadcast %cst_24 : f32 to vector<16x2xf32>
    %32 = arith.addf %31, %30 : vector<16x2xf32>
    %cst_25 = arith.constant 1.000000e+00 : f32
    %33 = vector.broadcast %cst_25 : f32 to vector<16x2xf32>
    %34 = arith.divf %33, %32 : vector<16x2xf32>
    %cst_26 = arith.constant 0.000000e+00 : f32
    %35 = vector.broadcast %cst_26 : f32 to vector<16x2xf32>
    %36 = arith.cmpf oge, %26, %35 : vector<16x2xf32>
    %cst_27 = arith.constant 1.000000e+00 : f32
    %37 = vector.broadcast %cst_27 : f32 to vector<16x2xf32>
    %38 = arith.subf %37, %34 : vector<16x2xf32>
    %39 = arith.select %36, %34, %38 : vector<16x2xi1>, vector<16x2xf32>
    %c0_28 = arith.constant 0 : index
    %c0_29 = arith.constant 0 : index
    %40 = vector.load %arg10[%c0_28, %c0_29] : memref<16x2xf32, #tpu.memory_space<vmem>>, vector<16x2xf32>
    tpu.vector_store %arg10[%c0_28, %c0_29], %39 {strides = array<i32>} : memref<16x2xf32, #tpu.memory_space<vmem>>, vector<16x2xf32>,
    return
  }
  func.func @transform_0(%arg0: i32) -> (i32, i32) {
    %c0_i32 = arith.constant 0 : i32
    %c0_i32_0 = arith.constant 0 : i32
    return %arg0, %c0_i32 : i32, i32
  }
  func.func @transform_1(%arg0: i32) -> (i32, i32) {
    %c0_i32 = arith.constant 0 : i32
    %c0_i32_0 = arith.constant 0 : i32
    %c0_i32_1 = arith.constant 0 : i32
    return %c0_i32, %c0_i32_0 : i32, i32
  }
  func.func @transform_2(%arg0: i32) -> (i32, i32) {
    %c0_i32 = arith.constant 0 : i32
    %c0_i32_0 = arith.constant 0 : i32
    %c0_i32_1 = arith.constant 0 : i32
    return %c0_i32, %c0_i32_0 : i32, i32
  }
  func.func @transform_3(%arg0: i32) -> (i32, i32) {
    %c0_i32 = arith.constant 0 : i32
    %c0_i32_0 = arith.constant 0 : i32
    %c0_i32_1 = arith.constant 0 : i32
    return %c0_i32, %c0_i32_0 : i32, i32
  }
  func.func @transform_4(%arg0: i32) -> (i32, i32) {
    %c0_i32 = arith.constant 0 : i32
    %c0_i32_0 = arith.constant 0 : i32
    %c0_i32_1 = arith.constant 0 : i32
    return %c0_i32, %c0_i32_0 : i32, i32
  }
  func.func @transform_5(%arg0: i32) -> (i32, i32) {
    %c0_i32 = arith.constant 0 : i32
    %c0_i32_0 = arith.constant 0 : i32
    %c0_i32_1 = arith.constant 0 : i32
    return %c0_i32, %c0_i32_0 : i32, i32
  }
  func.func @transform_6(%arg0: i32) -> (i32, i32) {
    %c0_i32 = arith.constant 0 : i32
    %c0_i32_0 = arith.constant 0 : i32
    %c0_i32_1 = arith.constant 0 : i32
    return %c0_i32, %c0_i32_0 : i32, i32
  }
  func.func @transform_7(%arg0: i32) -> (i32, i32) {
    %c0_i32 = arith.constant 0 : i32
    %c0_i32_0 = arith.constant 0 : i32
    %c0_i32_1 = arith.constant 0 : i32
    return %c0_i32, %c0_i32_0 : i32, i32
  }
  func.func @transform_8(%arg0: i32) -> (i32, i32) {
    %c0_i32 = arith.constant 0 : i32
    %c0_i32_0 = arith.constant 0 : i32
    %c0_i32_1 = arith.constant 0 : i32
    return %c0_i32, %c0_i32_0 : i32, i32
  }
  func.func @transform_9(%arg0: i32) -> (i32, i32) {
    %c0_i32 = arith.constant 0 : i32
    %c0_i32_0 = arith.constant 0 : i32
    return %arg0, %c0_i32 : i32, i32
  }
}

</mosaic_0001>

<llo_original>
// kernel: tpu_custom_call.1
$region0: #{tpu_custom_call.1}
  #allocation0 [shape = 'u32[]', space=smem, size = 0x4, offset = 0x4, fixed_abs, tag = 'smem constant byte address 0x4 - core index']
  #allocation1 [shape = 'u32[72,128]{1,0:T(1,128)}', space=vmem, size = 0x9000, scoped, tag = 'internal scratch']
  %s0 = inlined_call_operand.vmem [shape: f32[16,32], index: 0, kind: input, shape index: {}]
  %s1 = inlined_call_operand.vmem [shape: f32[32,100], index: 1, kind: input, shape index: {}]
  %s2 = inlined_call_operand.vmem [shape: f32[1,100], index: 2, kind: input, shape index: {}]
  %s3 = inlined_call_operand.vmem [shape: f32[100,50], index: 3, kind: input, shape index: {}]
  %s4 = inlined_call_operand.vmem [shape: f32[1,50], index: 4, kind: input, shape index: {}]
  %s5 = inlined_call_operand.vmem [shape: f32[50,10], index: 5, kind: input, shape index: {}]
  %s6 = inlined_call_operand.vmem [shape: f32[1,10], index: 6, kind: input, shape index: {}]
  %s7 = inlined_call_operand.vmem [shape: f32[10,2], index: 7, kind: input, shape index: {}]
  %s8 = inlined_call_operand.vmem [shape: f32[1,2], index: 8, kind: input, shape index: {}]
  %s9 = inlined_call_operand.vmem [shape: f32[16,2], index: 9, kind: output, shape index: {}]
  %s10 = sld [smem:[#allocation0]]
  $region46: #{tpu_custom_call.1} parent=0
    _
  %s12 = ssub.s32 1, %s10
  %s13 = scalar_select 0, %s12, %s10
  // Predicated region
  $region2: #{tpu_custom_call.1} parent=0 // pred_check
    _
  $region3: #{tpu_custom_call.1} parent=0 // pred_check_branch
    %15 = sbr.rel (0) target = $region5
  $region4: #{tpu_custom_call.1} parent=0 // pred_region
    _
  $region5: #{tpu_custom_call.1} parent=0 // pred_fallthru
    _
  // Predicated region
  $region6: #{tpu_custom_call.1} parent=0 // pred_check
    _
  $region7: #{tpu_custom_call.1} parent=0 // pred_check_branch
    %17 = sbr.rel (0) target = $region9
  $region8: #{tpu_custom_call.1} parent=0 // pred_region
    _
  $region9: #{tpu_custom_call.1} parent=0 // pred_fallthru
    _
  // Predicated region
  $region10: #{tpu_custom_call.1} parent=0 // pred_check
    _
  $region11: #{tpu_custom_call.1} parent=0 // pred_check_branch
    %19 = sbr.rel (0) target = $region13
  $region12: #{tpu_custom_call.1} parent=0 // pred_region
    _
  $region13: #{tpu_custom_call.1} parent=0 // pred_fallthru
    _
  // Predicated region
  $region14: #{tpu_custom_call.1} parent=0 // pred_check
    _
  $region15: #{tpu_custom_call.1} parent=0 // pred_check_branch
    %21 = sbr.rel (0) target = $region17
  $region16: #{tpu_custom_call.1} parent=0 // pred_region
    _
  $region17: #{tpu_custom_call.1} parent=0 // pred_fallthru
    _
  // Predicated region
  $region18: #{tpu_custom_call.1} parent=0 // pred_check
    _
  $region19: #{tpu_custom_call.1} parent=0 // pred_check_branch
    %23 = sbr.rel (0) target = $region21
  $region20: #{tpu_custom_call.1} parent=0 // pred_region
    _
  $region21: #{tpu_custom_call.1} parent=0 // pred_fallthru
    _
  // Predicated region
  $region22: #{tpu_custom_call.1} parent=0 // pred_check
    _
  $region23: #{tpu_custom_call.1} parent=0 // pred_check_branch
    %25 = sbr.rel (0) target = $region25
  $region24: #{tpu_custom_call.1} parent=0 // pred_region
    _
  $region25: #{tpu_custom_call.1} parent=0 // pred_fallthru
    _
  // Predicated region
  $region26: #{tpu_custom_call.1} parent=0 // pred_check
    _
  $region27: #{tpu_custom_call.1} parent=0 // pred_check_branch
    %27 = sbr.rel (0) target = $region29
  $region28: #{tpu_custom_call.1} parent=0 // pred_region
    _
  $region29: #{tpu_custom_call.1} parent=0 // pred_fallthru
    _
  // Predicated region
  $region30: #{tpu_custom_call.1} parent=0 // pred_check
    _
  $region31: #{tpu_custom_call.1} parent=0 // pred_check_branch
    %29 = sbr.rel (0) target = $region33
  $region32: #{tpu_custom_call.1} parent=0 // pred_region
    _
  $region33: #{tpu_custom_call.1} parent=0 // pred_fallthru
    _
  // Predicated region
  $region34: #{tpu_custom_call.1} parent=0 // pred_check
    _
  $region35: #{tpu_custom_call.1} parent=0 // pred_check_branch
    %31 = sbr.rel (0) target = $region37
  $region36: #{tpu_custom_call.1} parent=0 // pred_region
    _
  $region37: #{tpu_custom_call.1} parent=0 // pred_fallthru
    _
  %v32 = vld [vmem:[%s0] sm:$0xff]
  %v33 = vld [vmem:[%s0 + $0x8] sm:$0xff]
  %v34 = vld [vmem:[%s1] sm:$0xff]
  %v35 = vld [vmem:[%s1 + $0x8] sm:$0xff]
  %v36 = vld [vmem:[%s1 + $0x10] sm:$0xff]
  %v37 = vld [vmem:[%s1 + $0x18] sm:$0xff]
  %v38 = vld [vmem:[%s2] sm:$0x1]
  %v40 = vperm.slane %v38, 0
  %vm42 = vcmask 261120
  %v44 = vsel %vm42, %v32, 0
  %v47 = vsel %vm42, %v33, 0
  %49 = vmatpush.msra.mxu0 0.0
  %50 = vmatpush.msra.mxu0 0.0
  %51 = vmatpush.msra.mxu0 0.0
  %52 = vmatpush.msra.mxu0 0.0
  %53 = vmatpush.msra.mxu0 0.0
  %54 = vmatpush.msra.mxu0 0.0
  %55 = vmatpush.msra.mxu0 0.0
  %56 = vmatpush.msra.mxu0 0.0
  %57 = vmatpush.msra.mxu0 0.0
  %58 = vmatpush.msra.mxu0 0.0
  %59 = vmatpush.msra.mxu0 0.0
  %60 = vmatpush.msra.mxu0 0.0
  %61 = vmatpush.msra.mxu0 %v37
  %62 = vmatpush.msra.mxu0 %v36
  %63 = vmatpush.msra.mxu0 %v35
  %64 = vmatpush.msra.mxu0 %v34
  %65 = vmatmul.f32.gmra.mxu0 %v44
  %v66 = vpop.f32.mrf.mxu0
  %v67 = vadd.f32 %v40, %v66
  %68 = vmatmul.f32.gmra.mxu0 %v47
  %v69 = vpop.f32.mrf.mxu0
  %v70 = vadd.f32 %v40, %v69
  %71 = vdwg.mxu0
  %v72 = vmax.f32 %v67, 0.0
  %v73 = vmax.f32 %v70, 0.0
  %v74 = vld [vmem:[%s3] sm:$0xff]
  %v75 = vld [vmem:[%s3 + $0x8] sm:$0xff]
  %v76 = vld [vmem:[%s3 + $0x10] sm:$0xff]
  %v77 = vld [vmem:[%s3 + $0x18] sm:$0xff]
  %v78 = vld [vmem:[%s3 + $0x20] sm:$0xff]
  %v79 = vld [vmem:[%s3 + $0x28] sm:$0xff]
  %v80 = vld [vmem:[%s3 + $0x30] sm:$0xff]
  %v81 = vld [vmem:[%s3 + $0x38] sm:$0xff]
  %v82 = vld [vmem:[%s3 + $0x40] sm:$0xff]
  %v83 = vld [vmem:[%s3 + $0x48] sm:$0xff]
  %v84 = vld [vmem:[%s3 + $0x50] sm:$0xff]
  %v85 = vld [vmem:[%s3 + $0x58] sm:$0xff]
  %v86 = vld [vmem:[%s3 + $0x60] sm:$0xf]
  %v87 = vld [vmem:[%s4] sm:$0x1]
  %v89 = vperm.slane %v87, 0
  %vm91 = vcmask 818176
  %v93 = vsel %vm91, %v72, 0
  %v96 = vsel %vm91, %v73, 0
  %vm98 = vcmask 1043456
  %v100 = vsel %vm98, %v86, 0
  %102 = vmatpush.msra.mxu0 0.0
  %103 = vmatpush.msra.mxu0 0.0
  %104 = vmatpush.msra.mxu0 0.0
  %105 = vmatpush.msra.mxu0 %v100
  %106 = vmatpush.msra.mxu0 %v85
  %107 = vmatpush.msra.mxu0 %v84
  %108 = vmatpush.msra.mxu0 %v83
  %109 = vmatpush.msra.mxu0 %v82
  %110 = vmatpush.msra.mxu0 %v81
  %111 = vmatpush.msra.mxu0 %v80
  %112 = vmatpush.msra.mxu0 %v79
  %113 = vmatpush.msra.mxu0 %v78
  %114 = vmatpush.msra.mxu0 %v77
  %115 = vmatpush.msra.mxu0 %v76
  %116 = vmatpush.msra.mxu0 %v75
  %117 = vmatpush.msra.mxu0 %v74
  %118 = vmatmul.f32.gmra.mxu0 %v93
  %v119 = vpop.f32.mrf.mxu0
  %v120 = vadd.f32 %v89, %v119
  %121 = vmatmul.f32.gmra.mxu0 %v96
  %v122 = vpop.f32.mrf.mxu0
  %v123 = vadd.f32 %v89, %v122
  %124 = vdwg.mxu0
  %v125 = vmax.f32 %v120, 0.0
  %v126 = vmax.f32 %v123, 0.0
  %v127 = vld [vmem:[%s5] sm:$0xff]
  %v128 = vld [vmem:[%s5 + $0x8] sm:$0xff]
  %v129 = vld [vmem:[%s5 + $0x10] sm:$0xff]
  %v130 = vld [vmem:[%s5 + $0x18] sm:$0xff]
  %v131 = vld [vmem:[%s5 + $0x20] sm:$0xff]
  %v132 = vld [vmem:[%s5 + $0x28] sm:$0xff]
  %v133 = vld [vmem:[%s5 + $0x30] sm:$0x3]
  %v134 = vld [vmem:[%s6] sm:$0x1]
  %v136 = vperm.slane %v134, 0
  %vm138 = vcmask 408576
  %v140 = vsel %vm138, %v125, 0
  %v143 = vsel %vm138, %v126, 0
  %vm145 = vcmask 1041408
  %v147 = vsel %vm145, %v133, 0
  %149 = vmatpush.msra.mxu0 0.0
  %150 = vmatpush.msra.mxu0 0.0
  %151 = vmatpush.msra.mxu0 0.0
  %152 = vmatpush.msra.mxu0 0.0
  %153 = vmatpush.msra.mxu0 0.0
  %154 = vmatpush.msra.mxu0 0.0
  %155 = vmatpush.msra.mxu0 0.0
  %156 = vmatpush.msra.mxu0 0.0
  %157 = vmatpush.msra.mxu0 0.0
  %158 = vmatpush.msra.mxu0 %v147
  %159 = vmatpush.msra.mxu0 %v132
  %160 = vmatpush.msra.mxu0 %v131
  %161 = vmatpush.msra.mxu0 %v130
  %162 = vmatpush.msra.mxu0 %v129
  %163 = vmatpush.msra.mxu0 %v128
  %164 = vmatpush.msra.mxu0 %v127
  %165 = vmatmul.f32.gmra.mxu0 %v140
  %v166 = vpop.f32.mrf.mxu0
  %v167 = vadd.f32 %v136, %v166
  %168 = vmatmul.f32.gmra.mxu0 %v143
  %v169 = vpop.f32.mrf.mxu0
  %v170 = vadd.f32 %v136, %v169
  %171 = vdwg.mxu0
  %v172 = vmax.f32 %v167, 0.0
  %v173 = vmax.f32 %v170, 0.0
  %v174 = vld [vmem:[%s7] sm:$0xff]
  %v175 = vld [vmem:[%s7 + $0x8] sm:$0x3]
  %v176 = vld [vmem:[%s8] sm:$0x1]
  %v178 = vperm.slane %v176, 0
  %vm180 = vcmask 80896
  %v182 = vsel %vm180, %v172, 0
  %v185 = vsel %vm180, %v173, 0
  %v188 = vsel %vm145, %v175, 0
  %190 = vmatpush.msra.mxu0 0.0
  %191 = vmatpush.msra.mxu0 0.0
  %192 = vmatpush.msra.mxu0 0.0
  %193 = vmatpush.msra.mxu0 0.0
  %194 = vmatpush.msra.mxu0 0.0
  %195 = vmatpush.msra.mxu0 0.0
  %196 = vmatpush.msra.mxu0 0.0
  %197 = vmatpush.msra.mxu0 0.0
  %198 = vmatpush.msra.mxu0 0.0
  %199 = vmatpush.msra.mxu0 0.0
  %200 = vmatpush.msra.mxu0 0.0
  %201 = vmatpush.msra.mxu0 0.0
  %202 = vmatpush.msra.mxu0 0.0
  %203 = vmatpush.msra.mxu0 0.0
  %204 = vmatpush.msra.mxu0 %v188
  %205 = vmatpush.msra.mxu0 %v174
  %206 = vmatmul.f32.gmra.mxu0 %v182
  %v207 = vpop.f32.mrf.mxu0
  %v208 = vadd.f32 %v178, %v207
  %209 = vmatmul.f32.gmra.mxu0 %v185
  %v210 = vpop.f32.mrf.mxu0
  %v211 = vadd.f32 %v178, %v210
  %212 = vdwg.mxu0
  %v213 = vand.u32 2147483647, %v208
  %v214 = vand.u32 2147483647, %v211
  %v215 = vsub.f32 0.0, %v213
  %v216 = vsub.f32 0.0, %v214
  %v217 = vmul.f32 %v215, 1.442695
  %v218 = vpow.pop %v217
  %v219 = vmul.f32 %v216, 1.442695
  %v220 = vpow.pop %v219
  %v221 = vadd.f32 %v218, 1.0
  %v222 = vadd.f32 %v220, 1.0
  %v223 = vrcp.pop %v221
  %v224 = vmul.f32 %v221, %v223
  %v225 = vsub.f32 1.0, %v224
  %v226 = vmul.f32 %v223, %v225
  %v227 = vadd.f32 %v223, %v226
  %vm228 = vweird.f32 %v221
  %vm229 = vweird.f32 %v223
  %vm230 = vmor %vm228, %vm229
  %v231 = vsel %vm230, %v223, %v227
  %v232 = vand.u32 2147483647, %v221
  %vm233 = vcmp.eq.f32.partialorder %v232, 8.507059e+37
  %v234 = vand.u32 %v221, 2147483648
  %v235 = vor.u32 1.1754944e-38, %v234
  %v236 = vsel %vm233, %v235, %v231
  %v237 = vmul.f32 1.0, %v236
  %v238 = vrcp.pop %v222
  %v239 = vmul.f32 %v222, %v238
  %v240 = vsub.f32 1.0, %v239
  %v241 = vmul.f32 %v238, %v240
  %v242 = vadd.f32 %v238, %v241
  %vm243 = vweird.f32 %v222
  %vm244 = vweird.f32 %v238
  %vm245 = vmor %vm243, %vm244
  %v246 = vsel %vm245, %v238, %v242
  %v247 = vand.u32 2147483647, %v222
  %vm248 = vcmp.eq.f32.partialorder %v247, 8.507059e+37
  %v249 = vand.u32 %v222, 2147483648
  %v250 = vor.u32 1.1754944e-38, %v249
  %v251 = vsel %vm248, %v250, %v246
  %v252 = vmul.f32 1.0, %v251
  %vm253 = vcmp.ge.f32.partialorder %v208, 0.0
  %vm254 = vcmp.ge.f32.partialorder %v211, 0.0
  %v255 = vsub.f32 1.0, %v237
  %v256 = vsub.f32 1.0, %v252
  %v257 = vsel %vm253, %v237, %v255
  %v258 = vsel %vm254, %v252, %v256
  %vm259 = vcmask 15360
  %260 = vst.msk [vmem:[%s9] sm:$0xff] %vm259, %v257
  %261 = vst.msk [vmem:[%s9 + $0x8] sm:$0xff] %vm259, %v258
  // Predicated region
  $region38: #{tpu_custom_call.1} parent=0 // pred_check
    _
  $region39: #{tpu_custom_call.1} parent=0 // pred_check_branch
    %263 = sbr.rel (0) target = $region41
  $region40: #{tpu_custom_call.1} parent=0 // pred_region
    _
  $region41: #{tpu_custom_call.1} parent=0 // pred_fallthru
    _
  // Predicated region
  $region42: #{tpu_custom_call.1} parent=0 // pred_check
    _
  $region43: #{tpu_custom_call.1} parent=0 // pred_check_branch
    %265 = sbr.rel (0) target = $region45
  $region44: #{tpu_custom_call.1} parent=0 // pred_region
    _
  $region45: #{tpu_custom_call.1} parent=0 // pred_fallthru
    _

</llo_original>
